<compile_context>
chip_gen: v7x
topology: tpu7x:2x2x1
jax: 0.10.0
libtpu: 0.0.40
codegen_flags: <defaults>
</compile_context>

<pallas_src>
import math

import jax
import jax.numpy as jnp
from jax.experimental import pallas as pl
from jax.experimental.pallas import tpu as pltpu

NUM_USERS = 100
NUM_ITEMS = 1000          # self.num_items
NUM_NEG = 16              # self.num_neg

_LANES = 128              # lane-dense last dim
_TILE_ROWS = 1024         # rows per grid step (1024x128 int32 = 512 KiB, VMEM-safe)

# Python-float scale (constant-folds into the kernel as an immediate).
_SCALE = float(NUM_ITEMS) / float(1 << 24)
_NEG_LOG_N = -math.log(float(NUM_ITEMS))


# ----------------------------------------------------------------------------- kernels
def _sampler_prng_kernel(seed_ref, neg_ref):
    """seed_ref: SMEM (1,) int32 scalar-prefetch; neg_ref: int32 (tile_rows, 128)."""
    # Salt with program id so parallel grid steps / v7x cores get distinct streams.
    pltpu.prng_seed(seed_ref[0] + pl.program_id(0))
    raw = pltpu.prng_random_bits(neg_ref.shape)
    if raw.dtype != jnp.uint32:              # older versions return int32 bits
        raw = pltpu.bitcast(raw, jnp.uint32)
    u24 = (raw >> 8).astype(jnp.float32)     # top 24 bits -> exact f32
    idx = (u24 * _SCALE).astype(jnp.int32)   # truncation (values nonnegative)
    neg_ref[...] = jnp.minimum(idx, NUM_ITEMS - 1)   # clamp rare f32 round-up


def _sampler_bits_kernel(bits_ref, neg_ref):
    """Fallback: bits_ref uint32 (tile_rows, 128) -> neg_ref int32 (tile_rows, 128)."""
    u24 = (bits_ref[...] >> 8).astype(jnp.float32)
    idx = (u24 * _SCALE).astype(jnp.int32)
    neg_ref[...] = jnp.minimum(idx, NUM_ITEMS - 1)


# ----------------------------------------------------------------------------- builders
def _tile_rows_for(rows: int) -> int:
    # Either a multiple-of-8 tile, or a single block equal to the full array dims.
    return _TILE_ROWS if rows >= _TILE_ROWS else rows


def _build_prng_sampler(rows: int, tile_rows: int):
    return pl.pallas_call(
        _sampler_prng_kernel,
        out_shape=jax.ShapeDtypeStruct((rows, _LANES), jnp.int32),
        grid_spec=pltpu.PrefetchScalarGridSpec(
            num_scalar_prefetch=1,
            grid=(pl.cdiv(rows, tile_rows),),     # ragged tail handled by Pallas
            in_specs=[],
            out_specs=pl.BlockSpec((tile_rows, _LANES), lambda i, seed: (i, 0)),
        ),
        compiler_params=pltpu.CompilerParams(dimension_semantics=("parallel",)),
    )


def _build_bits_sampler(rows: int, tile_rows: int):
    return pl.pallas_call(
        _sampler_bits_kernel,
        out_shape=jax.ShapeDtypeStruct((rows, _LANES), jnp.int32),
        grid=(pl.cdiv(rows, tile_rows),),
        in_specs=[pl.BlockSpec((tile_rows, _LANES), lambda i: (i, 0))],
        out_specs=pl.BlockSpec((tile_rows, _LANES), lambda i: (i, 0)),
        compiler_params=pltpu.CompilerParams(dimension_semantics=("parallel",)),
    )


# ----------------------------------------------------------------------------- path probe
_HW_PRNG_OK = None


def _use_hw_prng() -> bool:
    """True iff the in-kernel Mosaic HW PRNG lowers & runs on this backend."""
    global _HW_PRNG_OK
    if _HW_PRNG_OK is None:
        if jax.default_backend() != "tpu":
            _HW_PRNG_OK = False
        else:
            try:
                probe = _build_prng_sampler(8, 8)(jnp.zeros((1,), jnp.int32))
                jax.block_until_ready(probe)
                _HW_PRNG_OK = True
            except Exception:
                # TODO(synk): drop this fallback once a real (non-interpret) TPU
                # execution path is guaranteed; the HW-PRNG kernel is the fast one.
                _HW_PRNG_OK = False
    return _HW_PRNG_OK


# ----------------------------------------------------------------------------- forward
def base_sampler_forward(user_id: jax.Array, seed: int = 0):
    """Pallas equivalent of base_sampler.forward(user_id).

    user_id: int array of shape (batch_size,). Only its shape is used (matches PyTorch).
    NOTE: vary `seed` per training step for torch-equivalent fresh randomness.
    Returns (neg_items int32 (B, NUM_NEG), log_prob float32 (B, NUM_NEG)).
    """
    batch_size = user_id.shape[0]
    total = batch_size * NUM_NEG
    rows = pl.cdiv(total, _LANES)
    tile_rows = _tile_rows_for(rows)

    if _use_hw_prng():
        # Fast path: bits generated on-chip; only the output stream hits HBM.
        neg_flat = _build_prng_sampler(rows, tile_rows)(
            jnp.asarray([seed], dtype=jnp.int32))
    else:
        # Interpret/CPU fallback: cheap RBG bits generated by XLA, mapped in Pallas.
        key = jax.random.key(seed, impl="rbg")
        bits = jax.random.bits(key, (rows, _LANES), dtype=jnp.uint32)
        neg_flat = _build_bits_sampler(rows, tile_rows)(bits)

    if total == rows * _LANES:
        # No padding tail: reshape is a free bitcast (no extra HBM copy).
        neg_items = neg_flat.reshape(batch_size, NUM_NEG)
    else:
        # Only slice (which materializes a copy) when a ragged tail actually exists.
        neg_items = neg_flat.reshape(-1)[:total].reshape(batch_size, NUM_NEG)

    # Constant log-prob emitted by the wrapper (free / fusable in XLA).
    log_prob = jnp.full((batch_size, NUM_NEG), _NEG_LOG_N, dtype=jnp.float32)
    return neg_items, log_prob


if __name__ == "__main__":
    key = jax.random.PRNGKey(0)
    batch_size = 8
    # Deterministic example "user_id" batch (values irrelevant to the forward pass,
    # matching the PyTorch module which only reads user_id.shape[0]).
    user_id = jax.random.randint(key, (batch_size,), 0, NUM_USERS, dtype=jnp.int32)

    neg_items, log_prob = base_sampler_forward(user_id, seed=0)
    jax.block_until_ready((neg_items, log_prob))

    # Sanity checks on semantics.
    assert neg_items.shape == (batch_size, NUM_NEG)
    assert log_prob.shape == (batch_size, NUM_NEG)
    assert neg_items.dtype == jnp.int32
    assert log_prob.dtype == jnp.float32
    assert bool(jnp.all(neg_items >= 0)) and bool(jnp.all(neg_items < NUM_ITEMS))
    assert bool(jnp.allclose(log_prob, -math.log(float(NUM_ITEMS))))

    print("KERNEL_OK")
</pallas_src>

<mosaic_0001>
module attributes {stable_mosaic.version = 11 : i64} {
  func.func @_sampler_bits_kernel(%arg0: i32, %arg1: memref<1x128xi32, #tpu.memory_space<vmem>>, %arg2: memref<1x128xi32, #tpu.memory_space<vmem>>) attributes {dimension_semantics = [#tpu.dimension_semantics<parallel>], iteration_bounds = array<i64: 1>, scalar_prefetch = 0 : i64, scratch_operands = 0 : i64, tpu.core_type = #tpu.core_type<tc>, window_params = [{transform_indices = @transform_0, window_bounds = array<i64: 1, 128>}, {transform_indices = @transform_1, window_bounds = array<i64: 1, 128>}]} {
    %c0 = arith.constant 0 : index
    %c0_0 = arith.constant 0 : index
    %0 = vector.load %arg1[%c0, %c0_0] : memref<1x128xi32, #tpu.memory_space<vmem>>, vector<1x128xi32>
    %c8_i32 = arith.constant 8 : i32
    %1 = vector.broadcast %c8_i32 : i32 to vector<1x128xi32>
    %2 = arith.shrui %0, %1 : vector<1x128xi32>
    %3 = arith.uitofp %2 : vector<1x128xi32> to vector<1x128xf32>
    %cst = arith.constant 5.96046448E-5 : f32
    %4 = vector.broadcast %cst : f32 to vector<1x128xf32>
    %5 = arith.mulf %3, %4 : vector<1x128xf32>
    %6 = arith.fptosi %5 : vector<1x128xf32> to vector<1x128xi32>
    %c999_i32 = arith.constant 999 : i32
    %7 = vector.broadcast %c999_i32 : i32 to vector<1x128xi32>
    %8 = arith.minsi %6, %7 : vector<1x128xi32>
    %c0_1 = arith.constant 0 : index
    %c0_2 = arith.constant 0 : index
    %9 = vector.load %arg2[%c0_1, %c0_2] : memref<1x128xi32, #tpu.memory_space<vmem>>, vector<1x128xi32>
    tpu.vector_store %arg2[%c0_1, %c0_2], %8 {strides = array<i32>} : memref<1x128xi32, #tpu.memory_space<vmem>>, vector<1x128xi32>,
    return
  }
  func.func @transform_0(%arg0: i32) -> (i32, i32) {
    %c0_i32 = arith.constant 0 : i32
    %c0_i32_0 = arith.constant 0 : i32
    return %arg0, %c0_i32 : i32, i32
  }
  func.func @transform_1(%arg0: i32) -> (i32, i32) {
    %c0_i32 = arith.constant 0 : i32
    %c0_i32_0 = arith.constant 0 : i32
    return %arg0, %c0_i32 : i32, i32
  }
}

</mosaic_0001>

<llo_original>
// kernel: tpu_custom_call.1
$region0: #{tpu_custom_call.1}
  #allocation0 [shape = 'u32[]', space=smem, size = 0x4, offset = 0x4, fixed_abs, tag = 'smem constant byte address 0x4 - core index']
  #allocation1 [shape = 'u32[144,128]{1,0:T(1,128)}', space=vmem, size = 0x12000, scoped, tag = 'internal scratch']
  %s0 = inlined_call_operand.hbm [shape: u32[1,128], index: 0, kind: input, shape index: {}]
  %s1 = inlined_call_operand.hbm [shape: s32[1,128], index: 1, kind: output, shape index: {}]
  %s2 = sld [smem:[#allocation0]]
  $region18: #{tpu_custom_call.1} parent=0
    _
  %s4 = ssub.s32 1, %s2
  %s5 = scalar_select 0, %s4, %s2
  $region1: #{tpu_custom_call.1} parent=0
    #allocation2 [shape = 'u8[512]{0}', space=vmem, size = 0x400, scoped, tag = 'input window, operand 0, single buffered']
    #allocation3 [shape = 's32[1]{0}', space=sflag, size = 0x4, scoped, tag = 'scoped memory for tpu_custom_call.1']
    #allocation4 [shape = 's32[1]{0}', space=sflag, size = 0x4, scoped, tag = 'scoped memory for tpu_custom_call.1']
    #allocation5 [shape = 'u8[512]{0}', space=vmem, size = 0x400, scoped, tag = 'output window, operand 0, single buffered']
    %6 = vsyncpa [#allocation3], 0
    %7 = vsyncpa [#allocation4], 0
    // Predicated region
    $region2: #{tpu_custom_call.1} parent=1 // pred_check
      _
    $region3: #{tpu_custom_call.1} parent=1 // pred_check_branch
      %9 = sbr.rel (0) target = $region5
    $region4: #{tpu_custom_call.1} parent=1 // pred_region
      %s11 = ssub.s32 16, 16
      %12 = vsyncadd [#allocation3], %s11
      %s14 = sshll.u32 [#allocation2], 4
      %s15 = int_to_ptr.vmem [resolvable:$true] %s14
      %17 = dma.hbm_to_vmem [thread:$0]  %s0, 16, %s15, [#allocation3]
    $region5: #{tpu_custom_call.1} parent=1 // pred_fallthru
      _
    // Predicated region
    $region6: #{tpu_custom_call.1} parent=1 // pred_check
      _
    $region7: #{tpu_custom_call.1} parent=1 // pred_check_branch
      %19 = sbr.rel (0) target = $region9
    $region8: #{tpu_custom_call.1} parent=1 // pred_region
      %20 = dma.done [#allocation3], 16
    $region9: #{tpu_custom_call.1} parent=1 // pred_fallthru
      _
    %v21 = vld [vmem:[#allocation2] sm:$0x1]
    %v22 = vshrl.u32 %v21, 8
    %v23 = vshrl.u32 %v22, 16
    %v24 = vand.u32 %v22, 65535
    %v25 = vcvt.s32.f32 %v23
    %v26 = vmul.f32 %v25, 65536.0
    %v27 = vcvt.s32.f32 %v24
    %v28 = vadd.f32 %v26, %v27
    %v29 = vmul.f32 %v28, 5.9604645e-05
    %v30 = vcvt.f32.s32.to.zero.pseudo %v29
    %vm31 = vcmp.lt.s32.totalorder %v30, 999
    %v32 = vsel %vm31, %v30, 999
    %33 = vst [vmem:[#allocation5] sm:$0x1] %v32
    // Predicated region
    $region10: #{tpu_custom_call.1} parent=1 // pred_check
      _
    $region11: #{tpu_custom_call.1} parent=1 // pred_check_branch
      %35 = sbr.rel (0) target = $region13
    $region12: #{tpu_custom_call.1} parent=1 // pred_region
      %s37 = ssub.s32 16, 16
      %38 = vsyncadd [#allocation4], %s37
      %s40 = sshll.u32 [#allocation5], 4
      %s41 = int_to_ptr.vmem [resolvable:$true] %s40
      %43 = dma.vmem_to_hbm [thread:$0]  %s41, 16, %s1, [#allocation4]
    $region13: #{tpu_custom_call.1} parent=1 // pred_fallthru
      _
    // Predicated region
    $region14: #{tpu_custom_call.1} parent=1 // pred_check
      _
    $region15: #{tpu_custom_call.1} parent=1 // pred_check_branch
      %45 = sbr.rel (0) target = $region17
    $region16: #{tpu_custom_call.1} parent=1 // pred_region
      %46 = dma.done [#allocation4], 16
    $region17: #{tpu_custom_call.1} parent=1 // pred_fallthru
      _
    %47 = vsyncpa [#allocation3], 1
    %48 = vsyncpa [#allocation4], 1

</llo_original>
